<compile_context>
chip_gen: v6e
topology: v6e:2x2x1
jax: 0.10.0
libtpu: 0.0.40
codegen_flags: <defaults>
</compile_context>

<pallas_src>
import functools

import jax
import jax.numpy as jnp
from jax.experimental import pallas as pl
from jax.experimental.pallas import tpu as pltpu

_LANES = 128
# Per-call VMEM budget used for tile sizing.  Keeps total (double-buffered x
# tile + double-buffered output tile + resident W^T/bias) under the 32 MiB
# default scoped limit on all of v5e / v6e / v7x.
_VMEM_BUDGET_BYTES = 24 * 1024 * 1024


# --------------------------------------------------------------------------- #
# Kernels
# --------------------------------------------------------------------------- #
def _conv_relu_pool_ncl_kernel(x_ref, w_ref, b_ref, o_ref, *, pool, l_valid):
    """Fused 1x1 conv + ReLU + AvgPool (stride == kernel) writing NCL output.

    x_ref: (NB, TL, C_in)  input dtype (f32 or bf16); cast to bf16 in-body.
    w_ref: (C_in, C_pad)   bf16 conv weight^T (resident across the grid).
    b_ref: (1, C_pad)      f32 bias.
    o_ref: (NB, C_pad, l_valid // pool)  output tile, already transposed (NCL).
    """
    nb, tl, c_in = x_ref.shape
    x = x_ref[...]
    if l_valid != tl:                # static drop of the AvgPool ragged tail
        x = x[:, :l_valid, :]
    # Cast to bf16 here (VPU work hidden under the matmul / DMA) so the wrapper
    # never materializes a bf16 copy of x in HBM.
    x = x.reshape(nb * l_valid, c_in).astype(jnp.bfloat16)
    y = jnp.dot(x, w_ref[...], preferred_element_type=jnp.float32)   # MXU
    y = jnp.maximum(y + b_ref[...], 0.0)                             # bias+ReLU (f32 VPU)
    c = y.shape[-1]
    # AvgPool with stride == kernel_size: non-overlapping windows -> sublane
    # reshape-sum on the VPU (no second MXU matmul, no dense pool matrix).
    # TODO(synk): if larger tiles ever make the ld/st or XLU slot binding,
    # switch this to a strided-row accumulation instead of the reshape-sum.
    pooled = y.reshape((nb * l_valid) // pool, pool, c).sum(axis=1) * (1.0 / pool)
    lout_t = l_valid // pool
    # Emit NCL directly: per-batch 2-D XLU transposes (nb is small & static), so
    # the wrapper needs no post-kernel HBM transpose pass.
    for i in range(nb):
        o_ref[i, :, :] = jnp.transpose(
            pooled[i * lout_t:(i + 1) * lout_t, :], (1, 0)).astype(o_ref.dtype)


def _conv_relu_pool_nlc_kernel(x_ref, w_ref, b_ref, o_ref, *, pool):
    """Flattened-row variant writing NLC output (rows = flattened (batch, time))."""
    tm, _ = x_ref.shape
    x = x_ref[...].astype(jnp.bfloat16)       # in-kernel cast (no HBM bf16 copy)
    y = jnp.dot(x, w_ref[...], preferred_element_type=jnp.float32)
    y = jnp.maximum(y + b_ref[...], 0.0)
    c = y.shape[-1]
    pooled = y.reshape(tm // pool, pool, c).sum(axis=1) * (1.0 / pool)
    o_ref[...] = pooled.astype(o_ref.dtype)


def _conv_relu_poolmat_kernel(x_ref, w_ref, b_ref, p_ref, o_ref, *, ncl):
    """Fallback for kernel_size != stride: pooling as a small (L_out, L) matmul."""
    x = x_ref[...].astype(jnp.bfloat16)
    y = jnp.dot(x, w_ref[...], preferred_element_type=jnp.float32)
    y = jnp.maximum(y + b_ref[...], 0.0)
    pooled = jnp.dot(p_ref[...], y, preferred_element_type=jnp.float32)  # (L_out, C_pad)
    if ncl:
        o_ref[...] = jnp.transpose(pooled, (1, 0)).astype(o_ref.dtype)
    else:
        o_ref[...] = pooled.astype(o_ref.dtype)


# --------------------------------------------------------------------------- #
# Tile selection
# --------------------------------------------------------------------------- #
def _max_rows_for_vmem(c_in, c_pad, pool, in_bytes, out_bytes,
                       budget=_VMEM_BUDGET_BYTES):
    """Largest number of input rows per grid step that fits the VMEM budget
    (double-buffered x tile + output tile, plus resident bf16 W^T / f32 bias).
    For the real module (C_in=500, C_out=512, pool=4, f32 in/out) this lands
    around ~4.7K rows, amortizing the ~0.35 us per-step overhead."""
    resident = 2 * c_in * c_pad * 2 + 2 * c_pad * 4 + (256 << 10)  # W(x2) + bias + slack
    per_row = 2 * c_in * in_bytes + -(-2 * c_pad * out_bytes // pool)
    avail = max(budget - resident, per_row * 8 * pool)
    return max(avail // per_row, 8 * pool)


def _pick_ncl_tiles(batch, seq_len, seq_use, pool, max_rows):
    """Tiling for the fused NCL kernel.

    Returns (nb, tl_block, n_l_tiles, l_valid), or None when no tiling that
    keeps every block (8,128)-legal fits the budget (caller then falls back to
    the flattened NLC path)."""
    if seq_use <= max_rows:
        # Whole (valid) sequence per batch; group `nb` batches per grid step.
        nb_cap = max(1, int(max_rows // max(seq_use, 1)))
        # Grouping batches needs tile-aligned in-kernel reshapes and no ragged
        # tail; otherwise fall back to one batch per step.
        if seq_use % (8 * pool) != 0 or seq_use != seq_len:
            nb_cap = 1
        nb_cap = min(nb_cap, 16)   # bound the static per-batch store unroll
        divisors = [d for d in range(1, batch + 1)
                    if batch % d == 0 and d <= nb_cap]
        steps = lambda d: batch // d
        # Largest tile that still leaves an even number of grid steps (>= 2) so
        # both v7x TensorCores get equal work; degrade gracefully otherwise.
        even = [d for d in divisors if steps(d) >= 2 and steps(d) % 2 == 0]
        multi = [d for d in divisors if steps(d) >= 2]
        nb = max(even) if even else (max(multi) if multi else max(divisors))
        return nb, seq_len, 1, seq_use
    # Sequence longer than the budget: sub-tile L.  Tile unit 128*pool keeps the
    # transposed output stores lane-dense (last dim a multiple of 128).
    unit = 128 * pool
    cands = [t for t in range(unit, int(min(seq_use, max_rows)) + 1, unit)
             if seq_use % t == 0]
    if not cands:
        return None
    steps = lambda t: batch * (seq_use // t)
    even = [t for t in cands if steps(t) >= 2 and steps(t) % 2 == 0]
    multi = [t for t in cands if steps(t) >= 2]
    tl = max(even) if even else (max(multi) if multi else max(cands))
    return 1, tl, seq_use // tl, tl


def _pick_nlc_rows_tile(n_rows, pool, max_rows):
    """Rows per grid step for the flattened-row NLC kernel: a multiple of
    8*pool dividing n_rows, <= max_rows, preferring an even number of steps."""
    unit = 8 * pool
    if n_rows % unit == 0:
        k = n_rows // unit
        cands = [unit * d for d in range(1, k + 1)
                 if k % d == 0 and unit * d <= max_rows]
        if cands:
            steps = lambda t: n_rows // t
            even = [t for t in cands if steps(t) >= 2 and steps(t) % 2 == 0]
            multi = [t for t in cands if steps(t) >= 2]
            return max(even) if even else (max(multi) if multi else max(cands))
    # TODO(synk): no aligned divisor fits the budget -> single full block; may
    # exceed the scoped VMEM limit for pathologically large, misaligned inputs.
    return n_rows


# --------------------------------------------------------------------------- #
# Wrappers
# --------------------------------------------------------------------------- #
def _pad_cout(w_t, b2d, c_out):
    """Pad C_out to a lane-dense multiple of 128 (MXU N dim / store alignment)."""
    c_pad = -(-c_out // _LANES) * _LANES
    if c_pad != c_out:
        w_t = jnp.pad(w_t, ((0, 0), (0, c_pad - c_out)))
        b2d = jnp.pad(b2d, ((0, 0), (0, c_pad - c_out)))
    return w_t, b2d, c_pad


def _video_pool_fast(x, weight, bias, pool, out_dtype, nlc_output, max_tile_rows):
    """Fast path: stride == kernel_size == pool."""
    batch, seq_len, c_in = x.shape
    c_out = weight.shape[0]
    l_out = seq_len // pool
    if l_out == 0:
        raise ValueError("sequence shorter than the pooling window")
    seq_use = l_out * pool

    # Weight / bias prep (tiny arrays): transpose for the MXU, bf16, pad C_out.
    w_t = weight.T.astype(jnp.bfloat16)                    # (C_in, C_out)
    b2d = bias.reshape(1, c_out).astype(jnp.float32)
    w_t, b2d, c_pad = _pad_cout(w_t, b2d, c_out)

    in_bytes = jnp.dtype(x.dtype).itemsize
    out_bytes = jnp.dtype(out_dtype).itemsize
    max_rows = (_max_rows_for_vmem(c_in, c_pad, pool, in_bytes, out_bytes)
                if max_tile_rows is None else max_tile_rows)

    if not nlc_output:
        tiles = _pick_ncl_tiles(batch, seq_len, seq_use, pool, max_rows)
        if tiles is not None:
            nb, tl_block, n_l_tiles, l_valid = tiles
            out = pl.pallas_call(
                functools.partial(_conv_relu_pool_ncl_kernel,
                                  pool=pool, l_valid=l_valid),
                out_shape=jax.ShapeDtypeStruct((batch, c_pad, l_out), out_dtype),
                grid_spec=pltpu.PrefetchScalarGridSpec(
                    num_scalar_prefetch=0,
                    grid=(batch // nb, n_l_tiles),
                    in_specs=[
                        pl.BlockSpec((nb, tl_block, c_in),
                                     lambda bi, li: (bi, li, 0)),
                        # Resident operands (constant index maps).
                        # TODO(synk): pipeline_mode=pl.Buffered(1) here would
                        # save ~0.5 MiB of VMEM on v7x when pushing tile sizes.
                        pl.BlockSpec((c_in, c_pad), lambda bi, li: (0, 0)),
                        pl.BlockSpec((1, c_pad), lambda bi, li: (0, 0)),
                    ],
                    out_specs=pl.BlockSpec((nb, c_pad, l_valid // pool),
                                           lambda bi, li: (bi, 0, li)),
                ),
                compiler_params=pltpu.CompilerParams(
                    dimension_semantics=("parallel", "parallel")),
            )(x, w_t, b2d)
            if c_pad != c_out:
                out = out[:, :c_out, :]     # no-op for the real 512-channel module
            return out

    # NLC output / shape-fallback path: flatten (batch, time) into matmul rows.
    if seq_use != seq_len:
        # Rare: ragged tail and no fused NCL tiling applied -> one extra slice.
        x = x[:, :seq_use, :]
    x2d = x.reshape(batch * seq_use, c_in)
    n_rows = batch * seq_use
    tm = _pick_nlc_rows_tile(n_rows, pool, max_rows)
    out2d = pl.pallas_call(
        functools.partial(_conv_relu_pool_nlc_kernel, pool=pool),
        out_shape=jax.ShapeDtypeStruct((n_rows // pool, c_pad), out_dtype),
        grid_spec=pltpu.PrefetchScalarGridSpec(
            num_scalar_prefetch=0,
            grid=(n_rows // tm,),
            in_specs=[
                pl.BlockSpec((tm, c_in), lambda i: (i, 0)),
                pl.BlockSpec((c_in, c_pad), lambda i: (0, 0)),
                pl.BlockSpec((1, c_pad), lambda i: (0, 0)),
            ],
            out_specs=pl.BlockSpec((tm // pool, c_pad), lambda i: (i, 0)),
        ),
        compiler_params=pltpu.CompilerParams(
            dimension_semantics=("parallel",)),
    )(x2d, w_t, b2d)
    out = out2d[:, :c_out].reshape(batch, l_out, c_out)
    if nlc_output:
        return out
    return jnp.transpose(out, (0, 2, 1))


def _video_pool_poolmat(x, weight, bias, kernel_size, stride, out_dtype,
                        nlc_output):
    """Fallback for kernel_size != stride (overlapping / gapped windows)."""
    batch, seq_len, c_in = x.shape
    c_out = weight.shape[0]
    l_out = (seq_len - kernel_size) // stride + 1
    if l_out <= 0:
        raise ValueError("sequence shorter than the pooling window")

    rows = jnp.arange(l_out)[:, None]
    cols = jnp.arange(seq_len)[None, :]
    pool_mat = jnp.where(
        (cols >= rows * stride) & (cols < rows * stride + kernel_size),
        1.0 / kernel_size, 0.0).astype(jnp.float32)

    w_t = weight.T.astype(jnp.bfloat16)
    b2d = bias.reshape(1, c_out).astype(jnp.float32)
    w_t, b2d, c_pad = _pad_cout(w_t, b2d, c_out)

    # TODO(synk): for long sequences, tile along L and replace the dense
    # (L_out, L) pool matrix + f32 MXU matmul with kernel_size shifted-row adds
    # (halo of kernel_size - stride rows); the per-batch full-L block below is
    # simple but VMEM-hungry, notably on v7x's 64 MiB VMEM.
    if nlc_output:
        out_shape = jax.ShapeDtypeStruct((batch, l_out, c_pad), out_dtype)
        out_spec = pl.BlockSpec((None, l_out, c_pad), lambda b: (b, 0, 0))
    else:
        out_shape = jax.ShapeDtypeStruct((batch, c_pad, l_out), out_dtype)
        out_spec = pl.BlockSpec((None, c_pad, l_out), lambda b: (b, 0, 0))

    out = pl.pallas_call(
        functools.partial(_conv_relu_poolmat_kernel, ncl=not nlc_output),
        out_shape=out_shape,
        grid_spec=pltpu.PrefetchScalarGridSpec(
            num_scalar_prefetch=0,
            grid=(batch,),
            in_specs=[
                pl.BlockSpec((None, seq_len, c_in), lambda b: (b, 0, 0)),
                pl.BlockSpec((c_in, c_pad), lambda b: (0, 0)),
                pl.BlockSpec((1, c_pad), lambda b: (0, 0)),
                pl.BlockSpec((l_out, seq_len), lambda b: (0, 0)),
            ],
            out_specs=out_spec,
        ),
        compiler_params=pltpu.CompilerParams(
            dimension_semantics=("parallel",)),
    )(x, w_t, b2d, pool_mat)
    if c_pad != c_out:
        out = out[:, :, :c_out] if nlc_output else out[:, :c_out, :]
    return out


def video_pool_pallas(x, weight, bias, kernel_size, stride, *,
                      out_dtype=jnp.float32, nlc_output=False,
                      max_tile_rows=None):
    """Forward pass of the PyTorch `video_pool` module.

    x:      (B, L, C_in) activations (f32 or bf16; bf16 avoids even the
            in-kernel cast).
    weight: (C_out, C_in) or (C_out, C_in, 1) 1x1 Conv1d weight.
    bias:   (C_out,).
    Returns (B, C_out, L_out) like PyTorch, or (B, L_out, C_out) when
    nlc_output=True (skips all transposes).  out_dtype=jnp.bfloat16 halves
    output HBM writes if the consumer accepts bf16.
    """
    if weight.ndim == 3:                       # PyTorch Conv1d weight (O, I, 1)
        weight = weight.reshape(weight.shape[0], weight.shape[1])
    if kernel_size == stride:
        return _video_pool_fast(x, weight, bias, kernel_size, out_dtype,
                                nlc_output, max_tile_rows)
    return _video_pool_poolmat(x, weight, bias, kernel_size, stride,
                               out_dtype, nlc_output)


# --------------------------------------------------------------------------- #
# Reference + tests
# --------------------------------------------------------------------------- #
def _reference(x, weight, bias, kernel_size, stride):
    """Pure-JAX f32 reference of the PyTorch forward pass."""
    y = jnp.einsum("blc,oc->blo", x, weight) + bias[None, None, :]   # 1x1 conv
    y = jnp.maximum(y, 0.0)                                          # relu
    batch, seq_len, c_out = y.shape
    l_out = (seq_len - kernel_size) // stride + 1
    if kernel_size == stride:
        win = y[:, :l_out * kernel_size, :].reshape(batch, l_out, kernel_size, c_out)
        pooled = win.mean(axis=2)
    else:
        pooled = jnp.stack(
            [y[:, t * stride: t * stride + kernel_size, :].mean(axis=1)
             for t in range(l_out)], axis=1)
    return jnp.transpose(pooled, (0, 2, 1))                          # (B, C_out, L_out)


def _make_inputs(key, batch, seq_len, c_in, c_out):
    kx, kw, kb = jax.random.split(key, 3)
    x = jax.random.normal(kx, (batch, seq_len, c_in), dtype=jnp.float32)
    bound = 1.0 / (c_in ** 0.5)
    weight = jax.random.uniform(kw, (c_out, c_in), jnp.float32, -bound, bound)
    bias = jax.random.uniform(kb, (c_out,), jnp.float32, -bound, bound)
    return x, weight, bias


if __name__ == "__main__":
    # Small stand-ins for the module's (input_size=500 -> hidden_size=512,
    # kernel=stride=4) configuration.  bf16 MXU operands -> ~1e-2 tolerance
    # against the f32 reference.
    key = jax.random.PRNGKey(0)
    k1, k2, k3, k4 = jax.random.split(key, 4)
    tol = dict(atol=2e-2, rtol=2e-2)

    # 1) Fused NCL path: whole-sequence blocks, two batches per grid step.
    x, w, b = _make_inputs(k1, 4, 32, 100, 128)
    out = jax.block_until_ready(video_pool_pallas(x, w, b, 4, 4))
    ref = _reference(x, w, b, 4, 4)
    assert out.shape == (4, 128, 8), out.shape
    assert jnp.allclose(out, ref, **tol), "fused NCL path mismatch"

    # 1b) NLC output option (no transposes at all).
    out_nlc = jax.block_until_ready(video_pool_pallas(x, w, b, 4, 4,
                                                      nlc_output=True))
    assert out_nlc.shape == (4, 8, 128), out_nlc.shape
    assert jnp.allclose(out_nlc, jnp.transpose(ref, (0, 2, 1)), **tol), \
        "NLC path mismatch"

    # 2) Ragged tail (L=35 -> 32 used) + C_out not a multiple of 128.
    x2, w2, b2 = _make_inputs(k2, 4, 35, 72, 96)
    out2 = jax.block_until_ready(video_pool_pallas(x2, w2, b2, 4, 4))
    ref2 = _reference(x2, w2, b2, 4, 4)
    assert out2.shape == (4, 96, 8), out2.shape
    assert jnp.allclose(out2, ref2, **tol), "ragged-tail path mismatch"

    # 3) Sub-tiled sequence (forces the lane-dense L-tiling branch).
    x3, w3, b3 = _make_inputs(k3, 2, 1024, 64, 128)
    out3 = jax.block_until_ready(
        video_pool_pallas(x3, w3, b3, 4, 4, max_tile_rows=512))
    ref3 = _reference(x3, w3, b3, 4, 4)
    assert out3.shape == (2, 128, 256), out3.shape
    assert jnp.allclose(out3, ref3, **tol), "sub-tiled path mismatch"

    # 4) kernel_size != stride fallback (overlapping windows).
    x4, w4, b4 = _make_inputs(k4, 2, 32, 64, 96)
    out4 = jax.block_until_ready(video_pool_pallas(x4, w4, b4, 4, 2))
    ref4 = _reference(x4, w4, b4, 4, 2)
    assert out4.shape == ref4.shape, out4.shape
    assert jnp.allclose(out4, ref4, **tol), "pool-matrix fallback mismatch"

    print("KERNEL_OK")
</pallas_src>

<mosaic_0001>
module attributes {stable_mosaic.version = 11 : i64} {
  func.func @_conv_relu_pool_ncl_kernel(%arg0: i32, %arg1: i32, %arg2: memref<2x32x100xf32, #tpu.memory_space<vmem>>, %arg3: memref<100x128xbf16, #tpu.memory_space<vmem>>, %arg4: memref<1x128xf32, #tpu.memory_space<vmem>>, %arg5: memref<2x128x8xf32, #tpu.memory_space<vmem>>) attributes {dimension_semantics = [#tpu.dimension_semantics<parallel>, #tpu.dimension_semantics<parallel>], iteration_bounds = array<i64: 2, 1>, scalar_prefetch = 0 : i64, scratch_operands = 0 : i64, tpu.core_type = #tpu.core_type<tc>, window_params = [{transform_indices = @transform_0, window_bounds = array<i64: 2, 32, 100>}, {pipeline_mode = #tpu.pipeline_mode<synchronous>, transform_indices = @transform_1, window_bounds = array<i64: 100, 128>}, {pipeline_mode = #tpu.pipeline_mode<synchronous>, transform_indices = @transform_2, window_bounds = array<i64: 1, 128>}, {transform_indices = @transform_3, window_bounds = array<i64: 2, 128, 8>}]} {
    %c0 = arith.constant 0 : index
    %c0_0 = arith.constant 0 : index
    %c0_1 = arith.constant 0 : index
    %0 = vector.load %arg2[%c0, %c0_0, %c0_1] : memref<2x32x100xf32, #tpu.memory_space<vmem>>, vector<2x32x100xf32>
    %1 = vector.shape_cast %0 : vector<2x32x100xf32> to vector<64x100xf32>
    %2 = arith.truncf %1 : vector<64x100xf32> to vector<64x100xbf16>
    %c0_2 = arith.constant 0 : index
    %c0_3 = arith.constant 0 : index
    %3 = vector.load %arg3[%c0_2, %c0_3] : memref<100x128xbf16, #tpu.memory_space<vmem>>, vector<100x128xbf16>
    %cst = arith.constant dense<0.000000e+00> : vector<64x128xf32>
    %4 = tpu.matmul %2, %3, %cst {dimension_numbers = #tpu.dot_dimension_numbers<[1], [0], [0], [1], [0, 0, 1, 1], [], []>} : vector<64x100xbf16>, vector<100x128xbf16>, vector<64x128xf32> -> vector<64x128xf32>
    %c0_4 = arith.constant 0 : index
    %c0_5 = arith.constant 0 : index
    %5 = vector.load %arg4[%c0_4, %c0_5] : memref<1x128xf32, #tpu.memory_space<vmem>>, vector<1x128xf32>
    %6 = vector.broadcast %5 : vector<1x128xf32> to vector<64x128xf32>
    %7 = arith.addf %4, %6 : vector<64x128xf32>
    %cst_6 = arith.constant 0.000000e+00 : f32
    %8 = vector.broadcast %cst_6 : f32 to vector<64x128xf32>
    %9 = arith.maximumf %7, %8 : vector<64x128xf32>
    %10 = vector.shape_cast %9 : vector<64x128xf32> to vector<16x4x128xf32>
    %cst_7 = arith.constant dense<0.000000e+00> : vector<16x128xf32>
    %11 = vector.multi_reduction <add>, %10, %cst_7 [1] : vector<16x4x128xf32> to vector<16x128xf32>
    %cst_8 = arith.constant 2.500000e-01 : f32
    %12 = vector.broadcast %cst_8 : f32 to vector<16x128xf32>
    %13 = arith.mulf %11, %12 : vector<16x128xf32>
    %14 = vector.extract_strided_slice %13 {offsets = [0, 0], sizes = [8, 128], strides = [1, 1]} : vector<16x128xf32> to vector<8x128xf32>
    %15 = tpu.transpose %14, [1, 0] : vector<8x128xf32> -> vector<128x8xf32>
    %c0_9 = arith.constant 0 : index
    %c0_10 = arith.constant 0 : index
    %c0_11 = arith.constant 0 : index
    %16 = vector.load %arg5[%c0_9, %c0_10, %c0_11] : memref<2x128x8xf32, #tpu.memory_space<vmem>>, vector<1x128x8xf32>
    %17 = vector.shape_cast %16 : vector<1x128x8xf32> to vector<128x8xf32>
    %18 = vector.shape_cast %15 : vector<128x8xf32> to vector<1x128x8xf32>
    tpu.vector_store %arg5[%c0_9, %c0_10, %c0_11], %18 {strides = array<i32>} : memref<2x128x8xf32, #tpu.memory_space<vmem>>, vector<1x128x8xf32>,
    %19 = vector.extract_strided_slice %13 {offsets = [8, 0], sizes = [8, 128], strides = [1, 1]} : vector<16x128xf32> to vector<8x128xf32>
    %20 = tpu.transpose %19, [1, 0] : vector<8x128xf32> -> vector<128x8xf32>
    %c1 = arith.constant 1 : index
    %c0_12 = arith.constant 0 : index
    %c0_13 = arith.constant 0 : index
    %21 = vector.load %arg5[%c1, %c0_12, %c0_13] : memref<2x128x8xf32, #tpu.memory_space<vmem>>, vector<1x128x8xf32>
    %22 = vector.shape_cast %21 : vector<1x128x8xf32> to vector<128x8xf32>
    %23 = vector.shape_cast %20 : vector<128x8xf32> to vector<1x128x8xf32>
    tpu.vector_store %arg5[%c1, %c0_12, %c0_13], %23 {strides = array<i32>} : memref<2x128x8xf32, #tpu.memory_space<vmem>>, vector<1x128x8xf32>,
    return
  }
  func.func @transform_0(%arg0: i32, %arg1: i32) -> (i32, i32, i32) {
    %c0_i32 = arith.constant 0 : i32
    %c0_i32_0 = arith.constant 0 : i32
    return %arg0, %arg1, %c0_i32 : i32, i32, i32
  }
  func.func @transform_1(%arg0: i32, %arg1: i32) -> (i32, i32) {
    %c0_i32 = arith.constant 0 : i32
    %c0_i32_0 = arith.constant 0 : i32
    %c0_i32_1 = arith.constant 0 : i32
    return %c0_i32, %c0_i32_0 : i32, i32
  }
  func.func @transform_2(%arg0: i32, %arg1: i32) -> (i32, i32) {
    %c0_i32 = arith.constant 0 : i32
    %c0_i32_0 = arith.constant 0 : i32
    %c0_i32_1 = arith.constant 0 : i32
    return %c0_i32, %c0_i32_0 : i32, i32
  }
  func.func @transform_3(%arg0: i32, %arg1: i32) -> (i32, i32, i32) {
    %c0_i32 = arith.constant 0 : i32
    %c0_i32_0 = arith.constant 0 : i32
    return %arg0, %c0_i32, %arg1 : i32, i32, i32
  }
}

</mosaic_0001>

<llo_original>
// kernel: tpu_custom_call.1
$region0: #{tpu_custom_call.1}
  #allocation0 [shape = 'u32[]', space=smem, size = 0x4, offset = 0x4, fixed_abs, tag = 'smem constant byte address 0x4 - core index']
  #allocation1 [shape = 'u32[144,128]{1,0:T(1,128)}', space=vmem, size = 0x12000, scoped, tag = 'internal scratch']
  %s0 = inlined_call_operand.hbm [shape: f32[4,32,100], index: 0, kind: input, shape index: {}]
  %s1 = inlined_call_operand.hbm [shape: bf16[100,128], index: 1, kind: input, shape index: {}]
  %s2 = inlined_call_operand.vmem [shape: f32[1,128], index: 2, kind: input, shape index: {}]
  %s3 = inlined_call_operand.vmem [shape: f32[4,128,8], index: 3, kind: output, shape index: {}]
  %s4 = sld [smem:[#allocation0]]
  $region53: #{tpu_custom_call.1} parent=0
    _
  %s6 = ssub.s32 1, %s4
  %s7 = scalar_select 0, %s6, %s4
  $region1: #{tpu_custom_call.1} parent=0
    #allocation2 [shape = 'u8[65536]{0}', space=vmem, size = 0x10000, scoped, tag = 'input window, operand 0']
    #allocation3 [shape = 's32[2]{0}', space=sflag, size = 0x8, scoped, tag = 'scoped memory for tpu_custom_call.1']
    #allocation4 [shape = 'u8[26624]{0}', space=vmem, size = 0x6800, scoped, tag = 'input window, operand 1, single buffered']
    #allocation5 [shape = 's32[1]{0}', space=sflag, size = 0x4, scoped, tag = 'scoped memory for tpu_custom_call.1']
    %8 = vsyncpa [#allocation3], 0
    %s9 = scalar_lea.sflag [#allocation3], 1
    %10 = vsyncpa %s9, 0
    %11 = vsyncpa [#allocation5], 0
    loop: start=0, step=1, limit=4
    $region2: #{tpu_custom_call.1} parent=1 // loop_pre_header
      _
    $region3: #{tpu_custom_call.1} parent=1 // loop_header
      %s13 = sphi 0, %s17
      %p14 = scmp.ge.s32.totalorder %s13, 4
      %s20 = sphi 0, %s32
      %s21 = sphi 0, %s28
      %s22 = sphi 0, %s20
      %s23 = sphi 0, %s21
      %s24 = sphi 0, %s22
      %s25 = sphi 0, %s23
      %s37 = sphi 0, %s39
      %s40 = sphi 0, %s37
      %s41 = sphi 0, %s40
      %s57 = sphi 0, %s41
      %s61 = sphi 0, %s61
      %s63 = sphi 0, %s61
      %s64 = sphi 0, %s63
      %s78 = sphi 0, %s64
      %s82 = sphi 0, %s82
      %s84 = sphi 0, %s82
      %s85 = sphi 0, %s84
      %s99 = sphi 0, %s85
      %s107 = sphi 0, %s109
      %s110 = sphi 0, %s107
      %s111 = sphi 0, %s110
      %s127 = sphi 0, %s111
    $region4: #{tpu_custom_call.1} parent=1 // loop_header_branch
      %16 = sbr.rel (%p14) target = $region8
    $region5: #{tpu_custom_call.1} parent=1 // loop_body
      %s18 = ssub.s32 %s13, 1
      %s19 = ssub.s32 %s13, 2
      %s26 = sadd.s32 1, %s21
      %p27 = scmp.ge.s32.totalorder %s26, 1
      %s28 = scalar_select %p27, 0, %s26
      %s29 = sadd.s32 1, %s20
      %s30 = scalar_select %p27, %s29, %s20
      %p31 = scmp.ge.s32.totalorder %s30, 2
      %s32 = scalar_select %p31, 0, %s30
      %s33 = ssub.s32 %s20, %s32
      %s34 = ssub.s32 %s21, %s28
      %s35 = sor.u32 %s33, %s34
      %p36 = scmp.eq.s32.totalorder %s35, 0
      %s38 = sadd.s32 %s37, 1
      %s39 = scalar_select %p36, %s37, %s38
      %p42 = pneg %p36
      %p43 = scmp.eq.s32.totalorder %s13, 1
      %p44 = por %p42, %p43
      %p45 = scmp.ne.s32.totalorder %s37, %s40
      %p46 = scmp.eq.s32.totalorder %s13, 0
      %p47 = por %p45, %p46
      %p48 = scmp.ne.s32.totalorder %s37, %s40
      %p49 = scmp.eq.s32.totalorder %s18, 1
      %p50 = por %p48, %p49
      %p51 = scmp.ne.s32.totalorder %s40, %s41
      %p52 = scmp.eq.s32.totalorder %s18, 0
      %p53 = por %p51, %p52
      %p54 = scmp.ne.s32.totalorder %s40, %s41
      %p55 = scmp.eq.s32.totalorder %s19, 1
      %p56 = por %p54, %p55
      %p58 = scmp.ne.s32.totalorder %s41, %s57
      %p59 = scmp.eq.s32.totalorder %s19, 0
      %p60 = por %p58, %p59
      %s62 = sadd.s32 %s61, 1
      %p65 = scmp.eq.s32.totalorder %s13, 1
      %p66 = scmp.ne.s32.totalorder %s61, %s63
      %p67 = scmp.eq.s32.totalorder %s13, 0
      %p68 = por %p66, %p67
      %p69 = scmp.ne.s32.totalorder %s61, %s63
      %p70 = scmp.eq.s32.totalorder %s18, 1
      %p71 = por %p69, %p70
      %p72 = scmp.ne.s32.totalorder %s63, %s64
      %p73 = scmp.eq.s32.totalorder %s18, 0
      %p74 = por %p72, %p73
      %p75 = scmp.ne.s32.totalorder %s63, %s64
      %p76 = scmp.eq.s32.totalorder %s19, 1
      %p77 = por %p75, %p76
      %p79 = scmp.ne.s32.totalorder %s64, %s78
      %p80 = scmp.eq.s32.totalorder %s19, 0
      %p81 = por %p79, %p80
      %s83 = sadd.s32 %s82, 1
      %p86 = scmp.eq.s32.totalorder %s13, 1
      %p87 = scmp.ne.s32.totalorder %s82, %s84
      %p88 = scmp.eq.s32.totalorder %s13, 0
      %p89 = por %p87, %p88
      %p90 = scmp.ne.s32.totalorder %s82, %s84
      %p91 = scmp.eq.s32.totalorder %s18, 1
      %p92 = por %p90, %p91
      %p93 = scmp.ne.s32.totalorder %s84, %s85
      %p94 = scmp.eq.s32.totalorder %s18, 0
      %p95 = por %p93, %p94
      %p96 = scmp.ne.s32.totalorder %s84, %s85
      %p97 = scmp.eq.s32.totalorder %s19, 1
      %p98 = por %p96, %p97
      %p100 = scmp.ne.s32.totalorder %s85, %s99
      %p101 = scmp.eq.s32.totalorder %s19, 0
      %p102 = por %p100, %p101
      %s103 = ssub.s32 %s20, %s32
      %s104 = ssub.s32 %s21, %s28
      %s105 = sor.u32 %s103, %s104
      %p106 = scmp.eq.s32.totalorder %s105, 0
      %s108 = sadd.s32 %s107, 1
      %s109 = scalar_select %p106, %s107, %s108
      %p112 = pneg %p106
      %p113 = scmp.eq.s32.totalorder %s13, 1
      %p114 = por %p112, %p113
      %p115 = scmp.ne.s32.totalorder %s107, %s110
      %p116 = scmp.eq.s32.totalorder %s13, 0
      %p117 = por %p115, %p116
      %p118 = scmp.ne.s32.totalorder %s107, %s110
      %p119 = scmp.eq.s32.totalorder %s18, 1
      %p120 = por %p118, %p119
      %p121 = scmp.ne.s32.totalorder %s110, %s111
      %p122 = scmp.eq.s32.totalorder %s18, 0
      %p123 = por %p121, %p122
      %p124 = scmp.ne.s32.totalorder %s110, %s111
      %p125 = scmp.eq.s32.totalorder %s19, 1
      %p126 = por %p124, %p125
      %p128 = scmp.ne.s32.totalorder %s111, %s127
      %p129 = scmp.eq.s32.totalorder %s19, 0
      %p130 = por %p128, %p129
      %p131 = scmp.le.s32.totalorder 1, %s13
      %p132 = scmp.lt.s32.totalorder %s13, 3
      %p133 = pnand %p131, %p132
      %p134 = pneg %p133
      // Predicated region
      $region9: #{tpu_custom_call.1} parent=5 // pred_check
        _
      $region10: #{tpu_custom_call.1} parent=5 // pred_check_branch
        %136 = sbr.rel (%p133) target = $region12
      $region11: #{tpu_custom_call.1} parent=5 // pred_region
        %s137 = ssub.s32 %s13, 1
        // Predicated region
        $region13: #{tpu_custom_call.1} parent=11 // pred_check
          %p138 = pneg %p74
        $region14: #{tpu_custom_call.1} parent=11 // pred_check_branch
          %140 = sbr.rel (%p138) target = $region16
        $region15: #{tpu_custom_call.1} parent=11 // pred_region
          %s142 = ssub.s32 832, 832
          %143 = vsyncadd [#allocation5], %s142
          %s144 = sshll.u32 [#allocation4], 4
          %s145 = int_to_ptr.vmem [resolvable:$true] %s144
          %150 = dma.hbm_to_vmem [thread:$0]  %s1, 832, %s145, [#allocation5], 64, 64, 4
        $region16: #{tpu_custom_call.1} parent=11 // pred_fallthru
          _
        // Predicated region
        $region17: #{tpu_custom_call.1} parent=11 // pred_check
          %p151 = pneg %p95
        $region18: #{tpu_custom_call.1} parent=11 // pred_check_branch
          %153 = sbr.rel (%p151) target = $region20
        $region19: #{tpu_custom_call.1} parent=11 // pred_region
          _
        $region20: #{tpu_custom_call.1} parent=11 // pred_fallthru
          _
      $region12: #{tpu_custom_call.1} parent=5 // pred_fallthru
        _
      %p154 = scmp.lt.s32.totalorder %s13, 2
      // Predicated region
      $region21: #{tpu_custom_call.1} parent=5 // pred_check
        %p155 = pneg %p154
      $region22: #{tpu_custom_call.1} parent=5 // pred_check_branch
        %157 = sbr.rel (%p155) target = $region24
      $region23: #{tpu_custom_call.1} parent=5 // pred_region
        // Predicated region
        $region25: #{tpu_custom_call.1} parent=23 // pred_check
          %p158 = pneg %p47
        $region26: #{tpu_custom_call.1} parent=23 // pred_check_branch
          %160 = sbr.rel (%p158) target = $region28
        $region27: #{tpu_custom_call.1} parent=23 // pred_region
          %s161 = sand.u32 %s37, 1
          %s162 = scalar_lea.sflag [#allocation3], %s161
          %s163 = sand.u32 %s37, 1
          %s164 = smul.addr %s163, 64
          %s165 = scalar_lea.vmem [#allocation2], %s164
          %s166 = smul.u32 2, %s20
          %s167 = smul.u32 4, %s21
          %s169 = ssub.s32 1024, 1024
          %170 = vsyncadd %s162, %s169
          %s171 = smul.addr %s166, 4
          %s172 = sadd.s32 %s167, %s171
          %s173 = smul.addr %s172, 128
          %s174 = scalar_lea.hbm %s0, %s173
          %s175 = sshll.u32 %s165, 4
          %s176 = int_to_ptr.vmem [resolvable:$true] %s175
          %181 = dma.hbm_to_vmem [thread:$0]  %s174, 1024, %s176, %s162, 128, 128, 8
        $region28: #{tpu_custom_call.1} parent=23 // pred_fallthru
          _
      $region24: #{tpu_custom_call.1} parent=5 // pred_fallthru
        _
      %p182 = scmp.le.s32.totalorder 1, %s13
      %p183 = scmp.lt.s32.totalorder %s13, 3
      %p184 = pnand %p182, %p183
      %p185 = pneg %p184
      // Predicated region
      $region29: #{tpu_custom_call.1} parent=5 // pred_check
        _
      $region30: #{tpu_custom_call.1} parent=5 // pred_check_branch
        %187 = sbr.rel (%p184) target = $region32
      $region31: #{tpu_custom_call.1} parent=5 // pred_region
        %s188 = ssub.s32 %s13, 1
        %s189 = sand.u32 %s40, 1
        %s190 = scalar_lea.sflag [#allocation3], %s189
        %s191 = sand.u32 %s40, 1
        %s192 = smul.addr %s191, 64
        %s193 = scalar_lea.vmem [#allocation2], %s192
        // Predicated region
        $region33: #{tpu_custom_call.1} parent=31 // pred_check
          %p194 = pneg %p53
        $region34: #{tpu_custom_call.1} parent=31 // pred_check_branch
          %196 = sbr.rel (%p194) target = $region36
        $region35: #{tpu_custom_call.1} parent=31 // pred_region
          %197 = dma.done %s190, 1024
        $region36: #{tpu_custom_call.1} parent=31 // pred_fallthru
          _
        // Predicated region
        $region37: #{tpu_custom_call.1} parent=31 // pred_check
          %p198 = pneg %p74
        $region38: #{tpu_custom_call.1} parent=31 // pred_check_branch
          %200 = sbr.rel (%p198) target = $region40
        $region39: #{tpu_custom_call.1} parent=31 // pred_region
          %201 = dma.done [#allocation5], 832
        $region40: #{tpu_custom_call.1} parent=31 // pred_fallthru
          _
        %s202 = sand.u32 %s40, 1
        %s203 = scalar_lea.sflag [#allocation3], %s202
        %s204 = sand.u32 %s40, 1
        %s205 = smul.addr %s204, 64
        %s206 = scalar_lea.vmem [#allocation2], %s205
        %p207 = pneg %p53
        %p208 = pneg %p50
        %p209 = pneg %p74
        %p210 = pneg %p71
        %p211 = pneg %p95
        %p212 = pneg %p92
        %p213 = pneg %p123
        %p214 = pneg %p120
        %s215 = smul.u32 2, %s22
        %p216 = scmp.lt.s32.totalorder %s215, 3
        %s217 = scalar_select %p216, %s215, 3
        %p218 = scmp.lt.s32.totalorder %s23, 0
        %s219 = scalar_select %p218, %s23, 0
        %s220 = smul.addr %s217, 16
        %s221 = sadd.s32 %s219, %s220
        %s222 = smul.addr %s221, 8
        %s223 = scalar_lea.vmem %s3, %s222
        %s224 = smul.u32 2, %s22
        %s225 = smul.u32 4, %s23
        %s226 = smul.u32 2, %s22
        %p227 = scmp.lt.s32.totalorder %s226, 3
        %s228 = scalar_select %p227, %s226, 3
        %p229 = scmp.lt.s32.totalorder %s23, 0
        %s230 = scalar_select %p229, %s23, 0
        %s231 = smul.addr %s228, 16
        %s232 = sadd.s32 %s230, %s231
        %s233 = smul.addr %s232, 8
        %s234 = scalar_lea.vmem %s3, %s233
        %s235 = smul.u32 2, %s22
        %v237 = vld [vmem:[%s193] sm:$0xff]
        %v238 = vld [vmem:[%s193 + $0x8] sm:$0xff]
        %v239 = vld [vmem:[%s193 + $0x10] sm:$0xff]
        %v240 = vld [vmem:[%s193 + $0x18] sm:$0xff]
        %v241 = vld [vmem:[%s193 + $0x20] sm:$0xff]
        %v242 = vld [vmem:[%s193 + $0x28] sm:$0xff]
        %v243 = vld [vmem:[%s193 + $0x30] sm:$0xff]
        %v244 = vld [vmem:[%s193 + $0x38] sm:$0xff]
        %v245 = vpack.c.bf16 %v238, %v237
        %v246 = vpack.c.bf16 %v240, %v239
        %v247 = vpack.c.bf16 %v242, %v241
        %v248 = vpack.c.bf16 %v244, %v243
        %v249 = vld [vmem:[#allocation4] sm:$0xf]
        %v250 = vld [vmem:[#allocation4 + $0x4] sm:$0xf]
        %v251 = vld [vmem:[#allocation4 + $0x8] sm:$0xf]
        %v252 = vld [vmem:[#allocation4 + $0xc] sm:$0xf]
        %v253 = vld [vmem:[#allocation4 + $0x10] sm:$0xf]
        %v254 = vld [vmem:[#allocation4 + $0x14] sm:$0xf]
        %v255 = vld [vmem:[#allocation4 + $0x18] sm:$0xf]
        %v256 = vld [vmem:[#allocation4 + $0x1c] sm:$0xf]
        %v257 = vld [vmem:[#allocation4 + $0x20] sm:$0xf]
        %v258 = vld [vmem:[#allocation4 + $0x24] sm:$0xf]
        %v259 = vld [vmem:[#allocation4 + $0x28] sm:$0xf]
        %v260 = vld [vmem:[#allocation4 + $0x2c] sm:$0xf]
        %v261 = vld [vmem:[#allocation4 + $0x30] sm:$0x3]
        %v262 = vld [vmem:[%s2] sm:$0x1]
        %v264 = vlaneseq
        %v265 = vshrl.u32 %v264, 7
        %v266 = vsub.s32 0, %v265
        %v267 = vrot.slane %v262, %v266
        %v282 = vunpack.c.l.b16 %v249
        %v283 = vunpack.c.l.b16 %v250
        %v284 = vunpack.c.l.b16 %v251
        %v285 = vunpack.c.l.b16 %v252
        %v286 = vunpack.c.l.b16 %v253
        %v287 = vunpack.c.l.b16 %v254
        %v288 = vunpack.c.l.b16 %v255
        %v289 = vunpack.c.l.b16 %v256
        %v290 = vunpack.c.l.b16 %v257
        %v291 = vunpack.c.l.b16 %v258
        %v292 = vunpack.c.l.b16 %v259
        %v293 = vunpack.c.l.b16 %v260
        %v294 = vunpack.c.l.b16 %v261
        %v295 = vpack.c.b16 %v283, %v282
        %v296 = vpack.c.b16 %v285, %v284
        %v297 = vpack.c.b16 %v287, %v286
        %v298 = vpack.c.b16 %v289, %v288
        %v299 = vpack.c.b16 %v291, %v290
        %v300 = vpack.c.b16 %v293, %v292
        %v301 = vpack.c.b16 %v294, %v294
        %vm308 = vcmask 818176
        %v310 = vsel %vm308, %v245, 0
        %v313 = vsel %vm308, %v246, 0
        %v316 = vsel %vm308, %v247, 0
        %v319 = vsel %vm308, %v248, 0
        %vm321 = vcmask 1041408
        %v323 = vsel %vm321, %v301, 0
        %325 = vmatprep.subr.bf16.mxu0 0
        %326 = vmatpush1.bf16.msra.mxu0 0
        %327 = vmatprep.subr.bf16.mxu0 0
        %328 = vmatpush1.bf16.msra.mxu0 %v323
        %329 = vmatprep.subr.bf16.mxu0 0
        %330 = vmatpush1.bf16.msra.mxu0 %v300
        %331 = vmatprep.subr.bf16.mxu0 0
        %332 = vmatpush1.bf16.msra.mxu0 %v299
        %333 = vmatprep.subr.bf16.mxu0 0
        %334 = vmatpush1.bf16.msra.mxu0 %v298
        %335 = vmatprep.subr.bf16.mxu0 0
        %336 = vmatpush1.bf16.msra.mxu0 %v297
        %337 = vmatprep.subr.bf16.mxu0 0
        %338 = vmatpush1.bf16.msra.mxu0 %v296
        %339 = vmatprep.subr.bf16.mxu0 0
        %340 = vmatpush1.bf16.msra.mxu0 %v295
        %341 = vmatprep.subr.bf16.mxu0 0
        %342 = vmatpush2.bf16.msra.mxu0 0
        %343 = vmatprep.subr.bf16.mxu0 0
        %344 = vmatpush2.bf16.msra.mxu0 0
        %345 = vmatprep.subr.bf16.mxu0 0
        %346 = vmatpush2.bf16.msra.mxu0 0
        %347 = vmatprep.subr.bf16.mxu0 0
        %348 = vmatpush2.bf16.msra.mxu0 0
        %349 = vmatprep.subr.bf16.mxu0 0
        %350 = vmatpush2.bf16.msra.mxu0 0
        %351 = vmatprep.subr.bf16.mxu0 0
        %352 = vmatpush2.bf16.msra.mxu0 0
        %353 = vmatprep.subr.bf16.mxu0 0
        %354 = vmatpush2.bf16.msra.mxu0 0
        %355 = vmatprep.subr.bf16.mxu0 0
        %356 = vmatpush2.bf16.msra.mxu0 0
        %357 = vmatprep.mubr.bf16.mxu0 0
        %358 = vmatmul.mubr.bf16.gmra.mxu0 %v310
        %v359 = vpop.f32.mrf.mxu0
        %v360 = vadd.f32 %v267, %v359
        %v361 = vpop.f32.mrf.mxu0
        %v362 = vpop.f32.mrf.mxu0
        %v363 = vadd.f32 %v267, %v362
        %v364 = vpop.f32.mrf.mxu0
        %365 = vmatprep.mubr.bf16.mxu0 0
        %366 = vmatmul.mubr.bf16.gmra.mxu0 %v313
        %v367 = vpop.f32.mrf.mxu0
        %v368 = vadd.f32 %v267, %v367
        %v369 = vpop.f32.mrf.mxu0
        %v370 = vpop.f32.mrf.mxu0
        %v371 = vadd.f32 %v267, %v370
        %v372 = vpop.f32.mrf.mxu0
        %373 = vmatprep.mubr.bf16.mxu0 0
        %374 = vmatmul.mubr.bf16.gmra.mxu0 %v316
        %v375 = vpop.f32.mrf.mxu0
        %v376 = vadd.f32 %v267, %v375
        %v377 = vpop.f32.mrf.mxu0
        %v378 = vpop.f32.mrf.mxu0
        %v379 = vadd.f32 %v267, %v378
        %v380 = vpop.f32.mrf.mxu0
        %381 = vmatprep.mubr.bf16.mxu0 0
        %382 = vmatmul.mubr.bf16.gmra.mxu0 %v319
        %v383 = vpop.f32.mrf.mxu0
        %v384 = vadd.f32 %v267, %v383
        %v385 = vpop.f32.mrf.mxu0
        %v386 = vpop.f32.mrf.mxu0
        %v387 = vadd.f32 %v267, %v386
        %v388 = vpop.f32.mrf.mxu0
        %389 = vdwg.mxu0
        %v390 = vmax.f32 %v360, 0.0
        %v391 = vmax.f32 %v363, 0.0
        %v392 = vmax.f32 %v368, 0.0
        %v393 = vmax.f32 %v371, 0.0
        %v394 = vmax.f32 %v376, 0.0
        %v395 = vmax.f32 %v379, 0.0
        %v396 = vmax.f32 %v384, 0.0
        %v397 = vmax.f32 %v387, 0.0
        %v406 = vcombine.high %v390, %v390
        %v407 = vcombine.high %v391, %v391
        %v408 = vcombine.high %v392, %v392
        %v409 = vcombine.high %v393, %v393
        %v410 = vcombine.high %v394, %v394
        %v411 = vcombine.high %v395, %v395
        %v412 = vcombine.high %v396, %v396
        %v413 = vcombine.high %v397, %v397
        %vm422 = vcmask 1043456
        %v423 = vsel %vm422, %v390, 0.0
        %v424 = vrot.slane %v423, 4
        %v425 = vadd.f32 %v423, %v424
        %v426 = vrot.slane %v425, 2
        %v427 = vadd.f32 %v425, %v426
        %v428 = vrot.slane %v427, 1
        %v429 = vadd.f32 %v427, %v428
        %v430 = vsel %vm422, %v406, 0.0
        %v431 = vrot.slane %v430, 4
        %v432 = vadd.f32 %v430, %v431
        %v433 = vrot.slane %v432, 2
        %v434 = vadd.f32 %v432, %v433
        %v435 = vrot.slane %v434, 1
        %v436 = vadd.f32 %v434, %v435
        %v437 = vsel %vm422, %v391, 0.0
        %v438 = vrot.slane %v437, 4
        %v439 = vadd.f32 %v437, %v438
        %v440 = vrot.slane %v439, 2
        %v441 = vadd.f32 %v439, %v440
        %v442 = vrot.slane %v441, 1
        %v443 = vadd.f32 %v441, %v442
        %v444 = vsel %vm422, %v407, 0.0
        %v445 = vrot.slane %v444, 4
        %v446 = vadd.f32 %v444, %v445
        %v447 = vrot.slane %v446, 2
        %v448 = vadd.f32 %v446, %v447
        %v449 = vrot.slane %v448, 1
        %v450 = vadd.f32 %v448, %v449
        %v451 = vsel %vm422, %v392, 0.0
        %v452 = vrot.slane %v451, 4
        %v453 = vadd.f32 %v451, %v452
        %v454 = vrot.slane %v453, 2
        %v455 = vadd.f32 %v453, %v454
        %v456 = vrot.slane %v455, 1
        %v457 = vadd.f32 %v455, %v456
        %v458 = vsel %vm422, %v408, 0.0
        %v459 = vrot.slane %v458, 4
        %v460 = vadd.f32 %v458, %v459
        %v461 = vrot.slane %v460, 2
        %v462 = vadd.f32 %v460, %v461
        %v463 = vrot.slane %v462, 1
        %v464 = vadd.f32 %v462, %v463
        %v465 = vsel %vm422, %v393, 0.0
        %v466 = vrot.slane %v465, 4
        %v467 = vadd.f32 %v465, %v466
        %v468 = vrot.slane %v467, 2
        %v469 = vadd.f32 %v467, %v468
        %v470 = vrot.slane %v469, 1
        %v471 = vadd.f32 %v469, %v470
        %v472 = vsel %vm422, %v409, 0.0
        %v473 = vrot.slane %v472, 4
        %v474 = vadd.f32 %v472, %v473
        %v475 = vrot.slane %v474, 2
        %v476 = vadd.f32 %v474, %v475
        %v477 = vrot.slane %v476, 1
        %v478 = vadd.f32 %v476, %v477
        %v479 = vsel %vm422, %v394, 0.0
        %v480 = vrot.slane %v479, 4
        %v481 = vadd.f32 %v479, %v480
        %v482 = vrot.slane %v481, 2
        %v483 = vadd.f32 %v481, %v482
        %v484 = vrot.slane %v483, 1
        %v485 = vadd.f32 %v483, %v484
        %v486 = vsel %vm422, %v410, 0.0
        %v487 = vrot.slane %v486, 4
        %v488 = vadd.f32 %v486, %v487
        %v489 = vrot.slane %v488, 2
        %v490 = vadd.f32 %v488, %v489
        %v491 = vrot.slane %v490, 1
        %v492 = vadd.f32 %v490, %v491
        %v493 = vsel %vm422, %v395, 0.0
        %v494 = vrot.slane %v493, 4
        %v495 = vadd.f32 %v493, %v494
        %v496 = vrot.slane %v495, 2
        %v497 = vadd.f32 %v495, %v496
        %v498 = vrot.slane %v497, 1
        %v499 = vadd.f32 %v497, %v498
        %v500 = vsel %vm422, %v411, 0.0
        %v501 = vrot.slane %v500, 4
        %v502 = vadd.f32 %v500, %v501
        %v503 = vrot.slane %v502, 2
        %v504 = vadd.f32 %v502, %v503
        %v505 = vrot.slane %v504, 1
        %v506 = vadd.f32 %v504, %v505
        %v507 = vsel %vm422, %v396, 0.0
        %v508 = vrot.slane %v507, 4
        %v509 = vadd.f32 %v507, %v508
        %v510 = vrot.slane %v509, 2
        %v511 = vadd.f32 %v509, %v510
        %v512 = vrot.slane %v511, 1
        %v513 = vadd.f32 %v511, %v512
        %v514 = vsel %vm422, %v412, 0.0
        %v515 = vrot.slane %v514, 4
        %v516 = vadd.f32 %v514, %v515
        %v517 = vrot.slane %v516, 2
        %v518 = vadd.f32 %v516, %v517
        %v519 = vrot.slane %v518, 1
        %v520 = vadd.f32 %v518, %v519
        %v521 = vsel %vm422, %v397, 0.0
        %v522 = vrot.slane %v521, 4
        %v523 = vadd.f32 %v521, %v522
        %v524 = vrot.slane %v523, 2
        %v525 = vadd.f32 %v523, %v524
        %v526 = vrot.slane %v525, 1
        %v527 = vadd.f32 %v525, %v526
        %v528 = vsel %vm422, %v413, 0.0
        %v529 = vrot.slane %v528, 4
        %v530 = vadd.f32 %v528, %v529
        %v531 = vrot.slane %v530, 2
        %v532 = vadd.f32 %v530, %v531
        %v533 = vrot.slane %v532, 1
        %v534 = vadd.f32 %v532, %v533
        %v535 = vmul.f32 %v429, 0.25
        %v536 = vmul.f32 %v436, 0.25
        %v537 = vmul.f32 %v443, 0.25
        %v538 = vmul.f32 %v450, 0.25
        %v539 = vmul.f32 %v457, 0.25
        %v540 = vmul.f32 %v464, 0.25
        %v541 = vmul.f32 %v471, 0.25
        %v542 = vmul.f32 %v478, 0.25
        %v543 = vmul.f32 %v485, 0.25
        %v544 = vmul.f32 %v492, 0.25
        %v545 = vmul.f32 %v499, 0.25
        %v546 = vmul.f32 %v506, 0.25
        %v547 = vmul.f32 %v513, 0.25
        %v548 = vmul.f32 %v520, 0.25
        %v549 = vmul.f32 %v527, 0.25
        %v550 = vmul.f32 %v534, 0.25
        %vm559 = vcmask 1041409
        %v560 = vsel %vm559, %v536, %v535
        %vm561 = vcmask 1042434
        %v562 = vsel %vm561, %v537, %v560
        %vm563 = vcmask 1043459
        %v564 = vsel %vm563, %v538, %v562
        %vm565 = vcmask 1044484
        %v566 = vsel %vm565, %v539, %v564
        %vm567 = vcmask 1045509
        %v568 = vsel %vm567, %v540, %v566
        %vm569 = vcmask 1046534
        %v570 = vsel %vm569, %v541, %v568
        %vm571 = vcmask 1047559
        %v572 = vsel %vm571, %v542, %v570
        %574 = vxpose.xlu0.b32.start [1/16] %v572, 128
        %575 = vxpose.xlu0.b32.cont [2/16] 0.0, 128
        %576 = vxpose.xlu0.b32.cont [3/16] 0.0, 128
        %577 = vxpose.xlu0.b32.cont [4/16] 0.0, 128
        %578 = vxpose.xlu0.b32.cont [5/16] 0.0, 128
        %579 = vxpose.xlu0.b32.cont [6/16] 0.0, 128
        %580 = vxpose.xlu0.b32.cont [7/16] 0.0, 128
        %581 = vxpose.xlu0.b32.cont [8/16] 0.0, 128
        %582 = vxpose.xlu0.b32.cont [9/16] 0.0, 128
        %583 = vxpose.xlu0.b32.cont [10/16] 0.0, 128
        %584 = vxpose.xlu0.b32.cont [11/16] 0.0, 128
        %585 = vxpose.xlu0.b32.cont [12/16] 0.0, 128
        %586 = vxpose.xlu0.b32.cont [13/16] 0.0, 128
        %587 = vxpose.xlu0.b32.cont [14/16] 0.0, 128
        %588 = vxpose.xlu0.b32.cont [15/16] 0.0, 128
        %589 = vxpose.xlu0.b32.end [16/16] 0.0, 128
        %v590 = vpop.trf.xlu0
        %v591 = vpop.trf.xlu0
        %v592 = vpop.trf.xlu0
        %v593 = vpop.trf.xlu0
        %v594 = vpop.trf.xlu0
        %v595 = vpop.trf.xlu0
        %v596 = vpop.trf.xlu0
        %v597 = vpop.trf.xlu0
        %v598 = vpop.trf.xlu0
        %v599 = vpop.trf.xlu0
        %v600 = vpop.trf.xlu0
        %v601 = vpop.trf.xlu0
        %v602 = vpop.trf.xlu0
        %v603 = vpop.trf.xlu0
        %v604 = vpop.trf.xlu0
        %v605 = vpop.trf.xlu0
        %vm606 = vcmask 64512
        %607 = vst.msk [vmem:[%s234] sm:$0xff] %vm606, %v590
        %608 = vst.msk [vmem:[%s234 + $0x8] sm:$0xff] %vm606, %v591
        %609 = vst.msk [vmem:[%s234 + $0x10] sm:$0xff] %vm606, %v592
        %610 = vst.msk [vmem:[%s234 + $0x18] sm:$0xff] %vm606, %v593
        %611 = vst.msk [vmem:[%s234 + $0x20] sm:$0xff] %vm606, %v594
        %612 = vst.msk [vmem:[%s234 + $0x28] sm:$0xff] %vm606, %v595
        %613 = vst.msk [vmem:[%s234 + $0x30] sm:$0xff] %vm606, %v596
        %614 = vst.msk [vmem:[%s234 + $0x38] sm:$0xff] %vm606, %v597
        %615 = vst.msk [vmem:[%s234 + $0x40] sm:$0xff] %vm606, %v598
        %616 = vst.msk [vmem:[%s234 + $0x48] sm:$0xff] %vm606, %v599
        %617 = vst.msk [vmem:[%s234 + $0x50] sm:$0xff] %vm606, %v600
        %618 = vst.msk [vmem:[%s234 + $0x58] sm:$0xff] %vm606, %v601
        %619 = vst.msk [vmem:[%s234 + $0x60] sm:$0xff] %vm606, %v602
        %620 = vst.msk [vmem:[%s234 + $0x68] sm:$0xff] %vm606, %v603
        %621 = vst.msk [vmem:[%s234 + $0x70] sm:$0xff] %vm606, %v604
        %622 = vst.msk [vmem:[%s234 + $0x78] sm:$0xff] %vm606, %v605
        %v631 = vsel %vm559, %v544, %v543
        %v632 = vsel %vm561, %v545, %v631
        %v633 = vsel %vm563, %v546, %v632
        %v634 = vsel %vm565, %v547, %v633
        %v635 = vsel %vm567, %v548, %v634
        %v636 = vsel %vm569, %v549, %v635
        %v637 = vsel %vm571, %v550, %v636
        %639 = vxpose.xlu0.b32.start [1/16] %v637, 128
        %640 = vxpose.xlu0.b32.cont [2/16] 0.0, 128
        %641 = vxpose.xlu0.b32.cont [3/16] 0.0, 128
        %642 = vxpose.xlu0.b32.cont [4/16] 0.0, 128
        %643 = vxpose.xlu0.b32.cont [5/16] 0.0, 128
        %644 = vxpose.xlu0.b32.cont [6/16] 0.0, 128
        %645 = vxpose.xlu0.b32.cont [7/16] 0.0, 128
        %646 = vxpose.xlu0.b32.cont [8/16] 0.0, 128
        %647 = vxpose.xlu0.b32.cont [9/16] 0.0, 128
        %648 = vxpose.xlu0.b32.cont [10/16] 0.0, 128
        %649 = vxpose.xlu0.b32.cont [11/16] 0.0, 128
        %650 = vxpose.xlu0.b32.cont [12/16] 0.0, 128
        %651 = vxpose.xlu0.b32.cont [13/16] 0.0, 128
        %652 = vxpose.xlu0.b32.cont [14/16] 0.0, 128
        %653 = vxpose.xlu0.b32.cont [15/16] 0.0, 128
        %654 = vxpose.xlu0.b32.end [16/16] 0.0, 128
        %v655 = vpop.trf.xlu0
        %v656 = vpop.trf.xlu0
        %v657 = vpop.trf.xlu0
        %v658 = vpop.trf.xlu0
        %v659 = vpop.trf.xlu0
        %v660 = vpop.trf.xlu0
        %v661 = vpop.trf.xlu0
        %v662 = vpop.trf.xlu0
        %v663 = vpop.trf.xlu0
        %v664 = vpop.trf.xlu0
        %v665 = vpop.trf.xlu0
        %v666 = vpop.trf.xlu0
        %v667 = vpop.trf.xlu0
        %v668 = vpop.trf.xlu0
        %v669 = vpop.trf.xlu0
        %v670 = vpop.trf.xlu0
        %s671 = scalar_lea.vmem %s234, 128
        %672 = vst.msk [vmem:[%s671] sm:$0xff] %vm606, %v655
        %673 = vst.msk [vmem:[%s671 + $0x8] sm:$0xff] %vm606, %v656
        %674 = vst.msk [vmem:[%s671 + $0x10] sm:$0xff] %vm606, %v657
        %675 = vst.msk [vmem:[%s671 + $0x18] sm:$0xff] %vm606, %v658
        %676 = vst.msk [vmem:[%s671 + $0x20] sm:$0xff] %vm606, %v659
        %677 = vst.msk [vmem:[%s671 + $0x28] sm:$0xff] %vm606, %v660
        %678 = vst.msk [vmem:[%s671 + $0x30] sm:$0xff] %vm606, %v661
        %679 = vst.msk [vmem:[%s671 + $0x38] sm:$0xff] %vm606, %v662
        %680 = vst.msk [vmem:[%s671 + $0x40] sm:$0xff] %vm606, %v663
        %681 = vst.msk [vmem:[%s671 + $0x48] sm:$0xff] %vm606, %v664
        %682 = vst.msk [vmem:[%s671 + $0x50] sm:$0xff] %vm606, %v665
        %683 = vst.msk [vmem:[%s671 + $0x58] sm:$0xff] %vm606, %v666
        %684 = vst.msk [vmem:[%s671 + $0x60] sm:$0xff] %vm606, %v667
        %685 = vst.msk [vmem:[%s671 + $0x68] sm:$0xff] %vm606, %v668
        %686 = vst.msk [vmem:[%s671 + $0x70] sm:$0xff] %vm606, %v669
        %687 = vst.msk [vmem:[%s671 + $0x78] sm:$0xff] %vm606, %v670
        %s688 = smul.u32 2, %s22
        %p689 = scmp.lt.s32.totalorder %s688, 3
        %s690 = scalar_select %p689, %s688, 3
        %p691 = scmp.lt.s32.totalorder %s23, 0
        %s692 = scalar_select %p691, %s23, 0
        %s693 = smul.addr %s690, 16
        %s694 = sadd.s32 %s692, %s693
        %s695 = smul.addr %s694, 8
        %s696 = scalar_lea.vmem %s3, %s695
        // Predicated region
        $region41: #{tpu_custom_call.1} parent=31 // pred_check
          %p697 = pneg %p120
        $region42: #{tpu_custom_call.1} parent=31 // pred_check_branch
          %699 = sbr.rel (%p697) target = $region44
        $region43: #{tpu_custom_call.1} parent=31 // pred_region
          %s700 = smul.u32 2, %s22
        $region44: #{tpu_custom_call.1} parent=31 // pred_fallthru
          _
      $region32: #{tpu_custom_call.1} parent=5 // pred_fallthru
        _
      %p701 = scmp.le.s32.totalorder 2, %s13
      // Predicated region
      $region45: #{tpu_custom_call.1} parent=5 // pred_check
        %p702 = pneg %p701
      $region46: #{tpu_custom_call.1} parent=5 // pred_check_branch
        %704 = sbr.rel (%p702) target = $region48
      $region47: #{tpu_custom_call.1} parent=5 // pred_region
        %s705 = ssub.s32 %s13, 2
        // Predicated region
        $region49: #{tpu_custom_call.1} parent=47 // pred_check
          %p706 = pneg %p126
        $region50: #{tpu_custom_call.1} parent=47 // pred_check_branch
          %708 = sbr.rel (%p706) target = $region52
        $region51: #{tpu_custom_call.1} parent=47 // pred_region
          %s709 = smul.u32 2, %s24
          %p710 = scmp.lt.s32.totalorder %s709, 3
          %s711 = scalar_select %p710, %s709, 3
          %p712 = scmp.lt.s32.totalorder %s25, 0
          %s713 = scalar_select %p712, %s25, 0
          %s714 = smul.addr %s711, 16
          %s715 = sadd.s32 %s713, %s714
          %s716 = smul.addr %s715, 8
          %s717 = scalar_lea.vmem %s3, %s716
        $region52: #{tpu_custom_call.1} parent=47 // pred_fallthru
          _
      $region48: #{tpu_custom_call.1} parent=5 // pred_fallthru
        _
    $region6: #{tpu_custom_call.1} parent=1 // loop_footer
      %s17 = sadd.s32 1, %s13
    $region7: #{tpu_custom_call.1} parent=1 // loop_footer_branch
      %12 = sbr.rel target = $region3
    $region8: #{tpu_custom_call.1} parent=1 // loop_exit
      _
    %718 = vsyncpa [#allocation3], 1
    %s719 = scalar_lea.sflag [#allocation3], 1
    %720 = vsyncpa %s719, 1
    %721 = vsyncpa [#allocation5], 1

</llo_original>
